<compile_context>
chip_gen: v6e
topology: v6e:2x2x1
jax: 0.10.0
libtpu: 0.0.40
codegen_flags: <defaults>
</compile_context>

<pallas_src>
import functools

import jax
import jax.numpy as jnp
from jax import lax
from jax.experimental import pallas as pl
from jax.experimental.pallas import tpu as pltpu

_LANES = 128


def _pair(v):
    return (v, v) if isinstance(v, int) else tuple(v)


def _out_size(size, k, s, p, d, ceil_mode):
    """PyTorch max_pool output-size formula (incl. ceil_mode fixup)."""
    eff = d * (k - 1) + 1
    num = size + 2 * p - eff
    if ceil_mode:
        out = -(-num // s) + 1  # ceil-div
        if (out - 1) * s >= size + p:   # last window must start inside input+pad
            out -= 1
    else:
        out = num // s + 1
    return out


def _round_up(v, m):
    return -(-v // m) * m


def _vmem_capacity_bytes():
    try:
        return int(pltpu.get_tpu_info().vmem_capacity_bytes)
    except Exception:
        return 64 * 1024 * 1024          # conservative fallback (v7x per-TC)


def _is_v7x():
    try:
        kind = jax.devices()[0].device_kind.lower()
    except Exception:
        return False
    return ("v7" in kind) or ("tpu7" in kind)


def _dim_semantics(grid):
    """'parallel' everywhere; on v7x shard one even grid axis across the two
    TensorCores with CORE_PARALLEL so both cores stream HBM."""
    if _is_v7x():
        sems = [pltpu.PARALLEL] * len(grid)
        for i, g in enumerate(grid):
            if g >= 2 and g % 2 == 0:
                sems[i] = pltpu.CORE_PARALLEL
                break
        return tuple(sems)
    return ("parallel",) * len(grid)


def _pick_channel_tile(Kp, per_lane_bytes, budget):
    """Largest lane tile (multiple of 128 dividing Kp) that fits the VMEM
    budget while keeping >= min(4, Kp//128) grid steps for pipeline overlap.
    Never falls back to the full channel count when the budget is exceeded."""
    steps = max(1, min(4, Kp // _LANES))
    tc_cap = Kp // steps
    best = _LANES
    tc = _LANES
    while tc <= tc_cap:
        if Kp % tc == 0 and tc * per_lane_bytes <= budget:
            best = tc
        tc += _LANES
    return best


def _maxpool_kernel(x_ref, o_ref, *, KH, KW, sh, sw, dh, dw, Ho, Wo):
    """Pool one channels-minor slab (Hp, Wp, TC) -> (Ho, Wo, TC).

    Lanes = channels, so every max is a lane-dense VPU op.  Output strides are
    folded into the tap loads; partial maxima live in vregs and each output row
    is stored exactly once (full (Wo, TC) vreg planes).  No scratch buffers.
    """
    if sh == 1 and sw == 1:
        # Fully vectorized: KH*KW statically offset whole-block taps.
        acc = x_ref[0:Ho, 0:Wo, :]
        for kh in range(KH):
            for kw in range(KW):
                if kh == 0 and kw == 0:
                    continue
                acc = jnp.maximum(
                    acc, x_ref[kh * dh:kh * dh + Ho, kw * dw:kw * dw + Wo, :])
        o_ref[...] = acc.astype(o_ref.dtype)
        return

    def emit_rows(oh0, nrows):
        # Pool `nrows` consecutive output rows starting at `oh0` (unrolled so
        # the scheduler can interleave tap loads of neighbouring rows).  Each
        # tap is a (1, Wo, TC) sublane-strided ref load with the W output
        # stride folded in; H stride is folded into the row address.
        for r in range(nrows):
            oh = oh0 + r
            h0 = oh * sh
            acc = None
            for kh in range(KH):
                hi = h0 + kh * dh
                for kw in range(KW):
                    w0 = kw * dw
                    if sw == 1:
                        tap = x_ref[pl.ds(hi, 1), w0:w0 + Wo, :]
                    else:
                        tap = x_ref[pl.ds(hi, 1), pl.ds(w0, Wo, stride=sw), :]
                    acc = tap if acc is None else jnp.maximum(acc, tap)
            o_ref[pl.ds(oh, 1)] = acc.astype(o_ref.dtype)

    if Ho <= 128:
        emit_rows(0, Ho)                      # fully static unroll
    else:
        rows_per_step = 8                     # 8 output rows per loop step
        n_full = Ho // rows_per_step

        def body(c, carry):
            emit_rows(pl.multiple_of(c * rows_per_step, rows_per_step),
                      rows_per_step)
            return carry

        lax.fori_loop(0, n_full, body, 0)
        rem = Ho - n_full * rows_per_step
        if rem:
            emit_rows(n_full * rows_per_step, rem)


def _max_pool_channels_minor(x_cm, KH, KW, sh, sw, ph, pw, dh, dw, ceil_mode):
    """Max-pool an (H, W, K) channels-minor array -> (Ho, Wo, K)."""
    H, W, K = x_cm.shape
    Ho = _out_size(H, KH, sh, ph, dh, ceil_mode)
    Wo = _out_size(W, KW, sw, pw, dw, ceil_mode)

    # right/bottom padding so every window is fully materialized
    pad_hi_h = max(0, (Ho - 1) * sh + dh * (KH - 1) + 1 - H - ph)
    pad_hi_w = max(0, (Wo - 1) * sw + dw * (KW - 1) + 1 - W - pw)
    Hp, Wp = H + ph + pad_hi_h, W + pw + pad_hi_w

    if jnp.issubdtype(x_cm.dtype, jnp.floating):
        fill = -jnp.inf                       # exact identity for max
    else:
        fill = int(jnp.iinfo(x_cm.dtype).min)

    # lane padding -> unmasked (lane-dense) loads/stores; single fused pad pass
    Kp = max(_LANES, _round_up(K, _LANES))
    pads = ((ph, pad_hi_h), (pw, pad_hi_w), (0, Kp - K))
    if any(lo or hi for lo, hi in pads):
        x_cm = jnp.pad(x_cm, pads, constant_values=fill)

    itemsize = jnp.dtype(x_cm.dtype).itemsize
    # double-buffered in + out blocks, plus ~2 output blocks of value temps
    per_lane = (2 * Hp * Wp + 4 * Ho * Wo) * itemsize
    cap = _vmem_capacity_bytes()
    TC = _pick_channel_tile(Kp, per_lane, budget=int(cap * 0.45))
    need = TC * per_lane
    vmem_limit = min(int(cap * 0.9), max(need + (4 << 20), 32 << 20))
    # TODO(synk): very large spatial slabs (e.g. 1k x 1k images) additionally
    # need an output-row grid axis with halo rows; not needed for typical pools.

    grid = (Kp // TC,)
    kernel = functools.partial(_maxpool_kernel, KH=KH, KW=KW, sh=sh, sw=sw,
                               dh=dh, dw=dw, Ho=Ho, Wo=Wo)
    out = pl.pallas_call(
        kernel,
        out_shape=jax.ShapeDtypeStruct((Ho, Wo, Kp), x_cm.dtype),
        grid=grid,
        in_specs=[pl.BlockSpec((Hp, Wp, TC), lambda c: (0, 0, c))],
        out_specs=pl.BlockSpec((Ho, Wo, TC), lambda c: (0, 0, c)),
        compiler_params=pltpu.CompilerParams(
            dimension_semantics=_dim_semantics(grid),
            vmem_limit_bytes=vmem_limit),
    )(x_cm)
    return out[:, :, :K] if Kp != K else out


def max_pool2d_nhwc(x, kernel_size, stride=None, padding=0, dilation=1,
                    ceil_mode=False):
    """Relayout-free entry point for channels-last (N, H, W, C) tensors."""
    KH, KW = _pair(kernel_size)
    sh, sw = _pair(stride if stride is not None else kernel_size)
    ph, pw = _pair(padding)
    dh, dw = _pair(dilation)
    N, H, W, C = x.shape
    Ho = _out_size(H, KH, sh, ph, dh, ceil_mode)
    Wo = _out_size(W, KW, sw, pw, dw, ceil_mode)
    pad_hi_h = max(0, (Ho - 1) * sh + dh * (KH - 1) + 1 - H - ph)
    pad_hi_w = max(0, (Wo - 1) * sw + dw * (KW - 1) + 1 - W - pw)
    Hp, Wp = H + ph + pad_hi_h, W + pw + pad_hi_w

    if jnp.issubdtype(x.dtype, jnp.floating):
        fill = -jnp.inf
    else:
        fill = int(jnp.iinfo(x.dtype).min)

    Cp = max(_LANES, _round_up(C, _LANES))
    pads = ((0, 0), (ph, pad_hi_h), (pw, pad_hi_w), (0, Cp - C))
    if any(lo or hi for lo, hi in pads):
        x = jnp.pad(x, pads, constant_values=fill)

    itemsize = jnp.dtype(x.dtype).itemsize
    per_lane = (2 * Hp * Wp + 4 * Ho * Wo) * itemsize
    cap = _vmem_capacity_bytes()
    TC = _pick_channel_tile(Cp, per_lane, budget=int(cap * 0.45))
    need = TC * per_lane
    vmem_limit = min(int(cap * 0.9), max(need + (4 << 20), 32 << 20))

    grid = (N, Cp // TC)
    kernel = functools.partial(_maxpool_kernel, KH=KH, KW=KW, sh=sh, sw=sw,
                               dh=dh, dw=dw, Ho=Ho, Wo=Wo)
    out = pl.pallas_call(
        kernel,
        out_shape=jax.ShapeDtypeStruct((N, Ho, Wo, Cp), x.dtype),
        grid=grid,
        in_specs=[pl.BlockSpec((None, Hp, Wp, TC), lambda n, c: (n, 0, 0, c))],
        out_specs=pl.BlockSpec((None, Ho, Wo, TC), lambda n, c: (n, 0, 0, c)),
        compiler_params=pltpu.CompilerParams(
            dimension_semantics=_dim_semantics(grid),
            vmem_limit_bytes=vmem_limit),
    )(x)
    return out[..., :C] if Cp != C else out


def max_pool2d(x, kernel_size, stride=None, padding=0, dilation=1,
               ceil_mode=False):
    """Pallas TPU equivalent of torch.max_pool2d on an NCHW tensor.

    The (N,C,H,W) <-> channels-minor relayouts are layout plumbing required by
    the NCHW interface; channels-last pipelines should call max_pool2d_nhwc,
    which performs no relayout passes at all.
    """
    KH, KW = _pair(kernel_size)
    sh, sw = _pair(stride if stride is not None else kernel_size)
    ph, pw = _pair(padding)
    dh, dw = _pair(dilation)
    N, C, H, W = x.shape
    # channels-minor: (N, C, H, W) -> (H, W, N*C); lanes = N*C
    x_cm = jnp.transpose(x, (2, 3, 0, 1)).reshape(H, W, N * C)
    out_cm = _max_pool_channels_minor(x_cm, KH, KW, sh, sw, ph, pw, dh, dw,
                                      ceil_mode)
    Ho, Wo, _ = out_cm.shape
    return jnp.transpose(out_cm.reshape(Ho, Wo, N, C), (2, 3, 0, 1))


def _ref_max_pool2d(x, kernel_size, stride=None, padding=0, dilation=1,
                    ceil_mode=False):
    """Plain-JAX reference (lax.reduce_window) matching PyTorch semantics."""
    KH, KW = _pair(kernel_size)
    sh, sw = _pair(stride if stride is not None else kernel_size)
    ph, pw = _pair(padding)
    dh, dw = _pair(dilation)
    N, C, H, W = x.shape
    Ho = _out_size(H, KH, sh, ph, dh, ceil_mode)
    Wo = _out_size(W, KW, sw, pw, dw, ceil_mode)
    pad_hi_h = max(0, (Ho - 1) * sh + dh * (KH - 1) + 1 - H - ph)
    pad_hi_w = max(0, (Wo - 1) * sw + dw * (KW - 1) + 1 - W - pw)
    return lax.reduce_window(
        x, -jnp.inf, lax.max,
        window_dimensions=(1, 1, KH, KW),
        window_strides=(1, 1, sh, sw),
        padding=((0, 0), (0, 0), (ph, pad_hi_h), (pw, pad_hi_w)),
        window_dilation=(1, 1, dh, dw))


if __name__ == "__main__":
    key = jax.random.PRNGKey(0)
    x = jax.random.normal(key, (2, 4, 16, 16), dtype=jnp.float32)

    # Config 1: MaxPool2d(kernel_size=2)  -> stride 2 (strided row path)
    out1 = max_pool2d(x, kernel_size=2)
    jax.block_until_ready(out1)
    ref1 = _ref_max_pool2d(x, kernel_size=2)
    assert out1.shape == (2, 4, 8, 8)
    assert jnp.allclose(out1, ref1, rtol=1e-6, atol=1e-6)

    # Config 2: kernel=3, stride=2, padding=1, ceil_mode=True
    out2 = max_pool2d(x, kernel_size=3, stride=2, padding=1, dilation=1,
                      ceil_mode=True)
    jax.block_until_ready(out2)
    ref2 = _ref_max_pool2d(x, kernel_size=3, stride=2, padding=1, dilation=1,
                           ceil_mode=True)
    assert out2.shape == (2, 4, 9, 9)
    assert jnp.allclose(out2, ref2, rtol=1e-6, atol=1e-6)

    # Config 3: stride 1 (fully vectorized whole-block path)
    out3 = max_pool2d(x, kernel_size=3, stride=1, padding=1)
    jax.block_until_ready(out3)
    ref3 = _ref_max_pool2d(x, kernel_size=3, stride=1, padding=1)
    assert out3.shape == (2, 4, 16, 16)
    assert jnp.allclose(out3, ref3, rtol=1e-6, atol=1e-6)

    # Config 4: relayout-free channels-last entry point
    x_nhwc = jnp.transpose(x, (0, 2, 3, 1))
    out4 = max_pool2d_nhwc(x_nhwc, kernel_size=2)
    jax.block_until_ready(out4)
    assert out4.shape == (2, 8, 8, 4)
    assert jnp.allclose(jnp.transpose(out4, (0, 3, 1, 2)), ref1,
                        rtol=1e-6, atol=1e-6)

    print("KERNEL_OK")
</pallas_src>

<mosaic_0001>
module attributes {stable_mosaic.version = 11 : i64} {
  func.func @_maxpool_kernel(%arg0: i32, %arg1: memref<16x16x128xf32, #tpu.memory_space<vmem>>, %arg2: memref<8x8x128xf32, #tpu.memory_space<vmem>>) attributes {dimension_semantics = [#tpu.dimension_semantics<parallel>], iteration_bounds = array<i64: 1>, scalar_prefetch = 0 : i64, scratch_operands = 0 : i64, tpu.core_type = #tpu.core_type<tc>, window_params = [{transform_indices = @transform_0, window_bounds = array<i64: 16, 16, 128>}, {transform_indices = @transform_1, window_bounds = array<i64: 8, 8, 128>}]} {
    %c0 = arith.constant 0 : index
    %c0_0 = arith.constant 0 : index
    %c0_1 = arith.constant 0 : index
    %0 = tpu.strided_load %arg1[%c0, %c0_0, %c0_1] {strides = array<i32: 1, 2, 1>} : memref<16x16x128xf32, #tpu.memory_space<vmem>>, vector<1x8x128xf32>
    %c0_2 = arith.constant 0 : index
    %c1 = arith.constant 1 : index
    %c0_3 = arith.constant 0 : index
    %1 = tpu.strided_load %arg1[%c0_2, %c1, %c0_3] {strides = array<i32: 1, 2, 1>} : memref<16x16x128xf32, #tpu.memory_space<vmem>>, vector<1x8x128xf32>
    %2 = arith.maximumf %0, %1 : vector<1x8x128xf32>
    %c1_4 = arith.constant 1 : index
    %c0_5 = arith.constant 0 : index
    %c0_6 = arith.constant 0 : index
    %3 = tpu.strided_load %arg1[%c1_4, %c0_5, %c0_6] {strides = array<i32: 1, 2, 1>} : memref<16x16x128xf32, #tpu.memory_space<vmem>>, vector<1x8x128xf32>
    %4 = arith.maximumf %2, %3 : vector<1x8x128xf32>
    %c1_7 = arith.constant 1 : index
    %c1_8 = arith.constant 1 : index
    %c0_9 = arith.constant 0 : index
    %5 = tpu.strided_load %arg1[%c1_7, %c1_8, %c0_9] {strides = array<i32: 1, 2, 1>} : memref<16x16x128xf32, #tpu.memory_space<vmem>>, vector<1x8x128xf32>
    %6 = arith.maximumf %4, %5 : vector<1x8x128xf32>
    %c0_10 = arith.constant 0 : index
    %c0_11 = arith.constant 0 : index
    %c0_12 = arith.constant 0 : index
    %7 = vector.load %arg2[%c0_10, %c0_11, %c0_12] : memref<8x8x128xf32, #tpu.memory_space<vmem>>, vector<1x8x128xf32>
    tpu.vector_store %arg2[%c0_10, %c0_11, %c0_12], %6 {strides = array<i32>} : memref<8x8x128xf32, #tpu.memory_space<vmem>>, vector<1x8x128xf32>,
    %c2 = arith.constant 2 : index
    %c0_13 = arith.constant 0 : index
    %c0_14 = arith.constant 0 : index
    %8 = tpu.strided_load %arg1[%c2, %c0_13, %c0_14] {strides = array<i32: 1, 2, 1>} : memref<16x16x128xf32, #tpu.memory_space<vmem>>, vector<1x8x128xf32>
    %c2_15 = arith.constant 2 : index
    %c1_16 = arith.constant 1 : index
    %c0_17 = arith.constant 0 : index
    %9 = tpu.strided_load %arg1[%c2_15, %c1_16, %c0_17] {strides = array<i32: 1, 2, 1>} : memref<16x16x128xf32, #tpu.memory_space<vmem>>, vector<1x8x128xf32>
    %10 = arith.maximumf %8, %9 : vector<1x8x128xf32>
    %c3 = arith.constant 3 : index
    %c0_18 = arith.constant 0 : index
    %c0_19 = arith.constant 0 : index
    %11 = tpu.strided_load %arg1[%c3, %c0_18, %c0_19] {strides = array<i32: 1, 2, 1>} : memref<16x16x128xf32, #tpu.memory_space<vmem>>, vector<1x8x128xf32>
    %12 = arith.maximumf %10, %11 : vector<1x8x128xf32>
    %c3_20 = arith.constant 3 : index
    %c1_21 = arith.constant 1 : index
    %c0_22 = arith.constant 0 : index
    %13 = tpu.strided_load %arg1[%c3_20, %c1_21, %c0_22] {strides = array<i32: 1, 2, 1>} : memref<16x16x128xf32, #tpu.memory_space<vmem>>, vector<1x8x128xf32>
    %14 = arith.maximumf %12, %13 : vector<1x8x128xf32>
    %c1_23 = arith.constant 1 : index
    %c0_24 = arith.constant 0 : index
    %c0_25 = arith.constant 0 : index
    %15 = vector.load %arg2[%c1_23, %c0_24, %c0_25] : memref<8x8x128xf32, #tpu.memory_space<vmem>>, vector<1x8x128xf32>
    tpu.vector_store %arg2[%c1_23, %c0_24, %c0_25], %14 {strides = array<i32>} : memref<8x8x128xf32, #tpu.memory_space<vmem>>, vector<1x8x128xf32>,
    %c4 = arith.constant 4 : index
    %c0_26 = arith.constant 0 : index
    %c0_27 = arith.constant 0 : index
    %16 = tpu.strided_load %arg1[%c4, %c0_26, %c0_27] {strides = array<i32: 1, 2, 1>} : memref<16x16x128xf32, #tpu.memory_space<vmem>>, vector<1x8x128xf32>
    %c4_28 = arith.constant 4 : index
    %c1_29 = arith.constant 1 : index
    %c0_30 = arith.constant 0 : index
    %17 = tpu.strided_load %arg1[%c4_28, %c1_29, %c0_30] {strides = array<i32: 1, 2, 1>} : memref<16x16x128xf32, #tpu.memory_space<vmem>>, vector<1x8x128xf32>
    %18 = arith.maximumf %16, %17 : vector<1x8x128xf32>
    %c5 = arith.constant 5 : index
    %c0_31 = arith.constant 0 : index
    %c0_32 = arith.constant 0 : index
    %19 = tpu.strided_load %arg1[%c5, %c0_31, %c0_32] {strides = array<i32: 1, 2, 1>} : memref<16x16x128xf32, #tpu.memory_space<vmem>>, vector<1x8x128xf32>
    %20 = arith.maximumf %18, %19 : vector<1x8x128xf32>
    %c5_33 = arith.constant 5 : index
    %c1_34 = arith.constant 1 : index
    %c0_35 = arith.constant 0 : index
    %21 = tpu.strided_load %arg1[%c5_33, %c1_34, %c0_35] {strides = array<i32: 1, 2, 1>} : memref<16x16x128xf32, #tpu.memory_space<vmem>>, vector<1x8x128xf32>
    %22 = arith.maximumf %20, %21 : vector<1x8x128xf32>
    %c2_36 = arith.constant 2 : index
    %c0_37 = arith.constant 0 : index
    %c0_38 = arith.constant 0 : index
    %23 = vector.load %arg2[%c2_36, %c0_37, %c0_38] : memref<8x8x128xf32, #tpu.memory_space<vmem>>, vector<1x8x128xf32>
    tpu.vector_store %arg2[%c2_36, %c0_37, %c0_38], %22 {strides = array<i32>} : memref<8x8x128xf32, #tpu.memory_space<vmem>>, vector<1x8x128xf32>,
    %c6 = arith.constant 6 : index
    %c0_39 = arith.constant 0 : index
    %c0_40 = arith.constant 0 : index
    %24 = tpu.strided_load %arg1[%c6, %c0_39, %c0_40] {strides = array<i32: 1, 2, 1>} : memref<16x16x128xf32, #tpu.memory_space<vmem>>, vector<1x8x128xf32>
    %c6_41 = arith.constant 6 : index
    %c1_42 = arith.constant 1 : index
    %c0_43 = arith.constant 0 : index
    %25 = tpu.strided_load %arg1[%c6_41, %c1_42, %c0_43] {strides = array<i32: 1, 2, 1>} : memref<16x16x128xf32, #tpu.memory_space<vmem>>, vector<1x8x128xf32>
    %26 = arith.maximumf %24, %25 : vector<1x8x128xf32>
    %c7 = arith.constant 7 : index
    %c0_44 = arith.constant 0 : index
    %c0_45 = arith.constant 0 : index
    %27 = tpu.strided_load %arg1[%c7, %c0_44, %c0_45] {strides = array<i32: 1, 2, 1>} : memref<16x16x128xf32, #tpu.memory_space<vmem>>, vector<1x8x128xf32>
    %28 = arith.maximumf %26, %27 : vector<1x8x128xf32>
    %c7_46 = arith.constant 7 : index
    %c1_47 = arith.constant 1 : index
    %c0_48 = arith.constant 0 : index
    %29 = tpu.strided_load %arg1[%c7_46, %c1_47, %c0_48] {strides = array<i32: 1, 2, 1>} : memref<16x16x128xf32, #tpu.memory_space<vmem>>, vector<1x8x128xf32>
    %30 = arith.maximumf %28, %29 : vector<1x8x128xf32>
    %c3_49 = arith.constant 3 : index
    %c0_50 = arith.constant 0 : index
    %c0_51 = arith.constant 0 : index
    %31 = vector.load %arg2[%c3_49, %c0_50, %c0_51] : memref<8x8x128xf32, #tpu.memory_space<vmem>>, vector<1x8x128xf32>
    tpu.vector_store %arg2[%c3_49, %c0_50, %c0_51], %30 {strides = array<i32>} : memref<8x8x128xf32, #tpu.memory_space<vmem>>, vector<1x8x128xf32>,
    %c8 = arith.constant 8 : index
    %c0_52 = arith.constant 0 : index
    %c0_53 = arith.constant 0 : index
    %32 = tpu.strided_load %arg1[%c8, %c0_52, %c0_53] {strides = array<i32: 1, 2, 1>} : memref<16x16x128xf32, #tpu.memory_space<vmem>>, vector<1x8x128xf32>
    %c8_54 = arith.constant 8 : index
    %c1_55 = arith.constant 1 : index
    %c0_56 = arith.constant 0 : index
    %33 = tpu.strided_load %arg1[%c8_54, %c1_55, %c0_56] {strides = array<i32: 1, 2, 1>} : memref<16x16x128xf32, #tpu.memory_space<vmem>>, vector<1x8x128xf32>
    %34 = arith.maximumf %32, %33 : vector<1x8x128xf32>
    %c9 = arith.constant 9 : index
    %c0_57 = arith.constant 0 : index
    %c0_58 = arith.constant 0 : index
    %35 = tpu.strided_load %arg1[%c9, %c0_57, %c0_58] {strides = array<i32: 1, 2, 1>} : memref<16x16x128xf32, #tpu.memory_space<vmem>>, vector<1x8x128xf32>
    %36 = arith.maximumf %34, %35 : vector<1x8x128xf32>
    %c9_59 = arith.constant 9 : index
    %c1_60 = arith.constant 1 : index
    %c0_61 = arith.constant 0 : index
    %37 = tpu.strided_load %arg1[%c9_59, %c1_60, %c0_61] {strides = array<i32: 1, 2, 1>} : memref<16x16x128xf32, #tpu.memory_space<vmem>>, vector<1x8x128xf32>
    %38 = arith.maximumf %36, %37 : vector<1x8x128xf32>
    %c4_62 = arith.constant 4 : index
    %c0_63 = arith.constant 0 : index
    %c0_64 = arith.constant 0 : index
    %39 = vector.load %arg2[%c4_62, %c0_63, %c0_64] : memref<8x8x128xf32, #tpu.memory_space<vmem>>, vector<1x8x128xf32>
    tpu.vector_store %arg2[%c4_62, %c0_63, %c0_64], %38 {strides = array<i32>} : memref<8x8x128xf32, #tpu.memory_space<vmem>>, vector<1x8x128xf32>,
    %c10 = arith.constant 10 : index
    %c0_65 = arith.constant 0 : index
    %c0_66 = arith.constant 0 : index
    %40 = tpu.strided_load %arg1[%c10, %c0_65, %c0_66] {strides = array<i32: 1, 2, 1>} : memref<16x16x128xf32, #tpu.memory_space<vmem>>, vector<1x8x128xf32>
    %c10_67 = arith.constant 10 : index
    %c1_68 = arith.constant 1 : index
    %c0_69 = arith.constant 0 : index
    %41 = tpu.strided_load %arg1[%c10_67, %c1_68, %c0_69] {strides = array<i32: 1, 2, 1>} : memref<16x16x128xf32, #tpu.memory_space<vmem>>, vector<1x8x128xf32>
    %42 = arith.maximumf %40, %41 : vector<1x8x128xf32>
    %c11 = arith.constant 11 : index
    %c0_70 = arith.constant 0 : index
    %c0_71 = arith.constant 0 : index
    %43 = tpu.strided_load %arg1[%c11, %c0_70, %c0_71] {strides = array<i32: 1, 2, 1>} : memref<16x16x128xf32, #tpu.memory_space<vmem>>, vector<1x8x128xf32>
    %44 = arith.maximumf %42, %43 : vector<1x8x128xf32>
    %c11_72 = arith.constant 11 : index
    %c1_73 = arith.constant 1 : index
    %c0_74 = arith.constant 0 : index
    %45 = tpu.strided_load %arg1[%c11_72, %c1_73, %c0_74] {strides = array<i32: 1, 2, 1>} : memref<16x16x128xf32, #tpu.memory_space<vmem>>, vector<1x8x128xf32>
    %46 = arith.maximumf %44, %45 : vector<1x8x128xf32>
    %c5_75 = arith.constant 5 : index
    %c0_76 = arith.constant 0 : index
    %c0_77 = arith.constant 0 : index
    %47 = vector.load %arg2[%c5_75, %c0_76, %c0_77] : memref<8x8x128xf32, #tpu.memory_space<vmem>>, vector<1x8x128xf32>
    tpu.vector_store %arg2[%c5_75, %c0_76, %c0_77], %46 {strides = array<i32>} : memref<8x8x128xf32, #tpu.memory_space<vmem>>, vector<1x8x128xf32>,
    %c12 = arith.constant 12 : index
    %c0_78 = arith.constant 0 : index
    %c0_79 = arith.constant 0 : index
    %48 = tpu.strided_load %arg1[%c12, %c0_78, %c0_79] {strides = array<i32: 1, 2, 1>} : memref<16x16x128xf32, #tpu.memory_space<vmem>>, vector<1x8x128xf32>
    %c12_80 = arith.constant 12 : index
    %c1_81 = arith.constant 1 : index
    %c0_82 = arith.constant 0 : index
    %49 = tpu.strided_load %arg1[%c12_80, %c1_81, %c0_82] {strides = array<i32: 1, 2, 1>} : memref<16x16x128xf32, #tpu.memory_space<vmem>>, vector<1x8x128xf32>
    %50 = arith.maximumf %48, %49 : vector<1x8x128xf32>
    %c13 = arith.constant 13 : index
    %c0_83 = arith.constant 0 : index
    %c0_84 = arith.constant 0 : index
    %51 = tpu.strided_load %arg1[%c13, %c0_83, %c0_84] {strides = array<i32: 1, 2, 1>} : memref<16x16x128xf32, #tpu.memory_space<vmem>>, vector<1x8x128xf32>
    %52 = arith.maximumf %50, %51 : vector<1x8x128xf32>
    %c13_85 = arith.constant 13 : index
    %c1_86 = arith.constant 1 : index
    %c0_87 = arith.constant 0 : index
    %53 = tpu.strided_load %arg1[%c13_85, %c1_86, %c0_87] {strides = array<i32: 1, 2, 1>} : memref<16x16x128xf32, #tpu.memory_space<vmem>>, vector<1x8x128xf32>
    %54 = arith.maximumf %52, %53 : vector<1x8x128xf32>
    %c6_88 = arith.constant 6 : index
    %c0_89 = arith.constant 0 : index
    %c0_90 = arith.constant 0 : index
    %55 = vector.load %arg2[%c6_88, %c0_89, %c0_90] : memref<8x8x128xf32, #tpu.memory_space<vmem>>, vector<1x8x128xf32>
    tpu.vector_store %arg2[%c6_88, %c0_89, %c0_90], %54 {strides = array<i32>} : memref<8x8x128xf32, #tpu.memory_space<vmem>>, vector<1x8x128xf32>,
    %c14 = arith.constant 14 : index
    %c0_91 = arith.constant 0 : index
    %c0_92 = arith.constant 0 : index
    %56 = tpu.strided_load %arg1[%c14, %c0_91, %c0_92] {strides = array<i32: 1, 2, 1>} : memref<16x16x128xf32, #tpu.memory_space<vmem>>, vector<1x8x128xf32>
    %c14_93 = arith.constant 14 : index
    %c1_94 = arith.constant 1 : index
    %c0_95 = arith.constant 0 : index
    %57 = tpu.strided_load %arg1[%c14_93, %c1_94, %c0_95] {strides = array<i32: 1, 2, 1>} : memref<16x16x128xf32, #tpu.memory_space<vmem>>, vector<1x8x128xf32>
    %58 = arith.maximumf %56, %57 : vector<1x8x128xf32>
    %c15 = arith.constant 15 : index
    %c0_96 = arith.constant 0 : index
    %c0_97 = arith.constant 0 : index
    %59 = tpu.strided_load %arg1[%c15, %c0_96, %c0_97] {strides = array<i32: 1, 2, 1>} : memref<16x16x128xf32, #tpu.memory_space<vmem>>, vector<1x8x128xf32>
    %60 = arith.maximumf %58, %59 : vector<1x8x128xf32>
    %c15_98 = arith.constant 15 : index
    %c1_99 = arith.constant 1 : index
    %c0_100 = arith.constant 0 : index
    %61 = tpu.strided_load %arg1[%c15_98, %c1_99, %c0_100] {strides = array<i32: 1, 2, 1>} : memref<16x16x128xf32, #tpu.memory_space<vmem>>, vector<1x8x128xf32>
    %62 = arith.maximumf %60, %61 : vector<1x8x128xf32>
    %c7_101 = arith.constant 7 : index
    %c0_102 = arith.constant 0 : index
    %c0_103 = arith.constant 0 : index
    %63 = vector.load %arg2[%c7_101, %c0_102, %c0_103] : memref<8x8x128xf32, #tpu.memory_space<vmem>>, vector<1x8x128xf32>
    tpu.vector_store %arg2[%c7_101, %c0_102, %c0_103], %62 {strides = array<i32>} : memref<8x8x128xf32, #tpu.memory_space<vmem>>, vector<1x8x128xf32>,
    return
  }
  func.func @transform_0(%arg0: i32) -> (i32, i32, i32) {
    %c0_i32 = arith.constant 0 : i32
    %c0_i32_0 = arith.constant 0 : i32
    %c0_i32_1 = arith.constant 0 : i32
    return %c0_i32, %c0_i32_0, %arg0 : i32, i32, i32
  }
  func.func @transform_1(%arg0: i32) -> (i32, i32, i32) {
    %c0_i32 = arith.constant 0 : i32
    %c0_i32_0 = arith.constant 0 : i32
    %c0_i32_1 = arith.constant 0 : i32
    return %c0_i32, %c0_i32_0, %arg0 : i32, i32, i32
  }
}

</mosaic_0001>

<llo_original>
// kernel: tpu_custom_call.1
$region0: #{tpu_custom_call.1}
  #allocation0 [shape = 'u32[]', space=smem, size = 0x4, offset = 0x4, fixed_abs, tag = 'smem constant byte address 0x4 - core index']
  #allocation1 [shape = 'u32[144,128]{1,0:T(1,128)}', space=vmem, size = 0x12000, scoped, tag = 'internal scratch']
  %s0 = inlined_call_operand.hbm [shape: f32[16,16,128], index: 0, kind: input, shape index: {}]
  %s1 = inlined_call_operand.hbm [shape: f32[8,8,128], index: 1, kind: output, shape index: {}]
  %s2 = sld [smem:[#allocation0]]
  $region18: #{tpu_custom_call.1} parent=0
    _
  %s4 = ssub.s32 1, %s2
  %s5 = scalar_select 0, %s4, %s2
  $region1: #{tpu_custom_call.1} parent=0
    #allocation2 [shape = 'u8[131072]{0}', space=vmem, size = 0x20000, scoped, tag = 'input window, operand 0, single buffered']
    #allocation3 [shape = 's32[1]{0}', space=sflag, size = 0x4, scoped, tag = 'scoped memory for tpu_custom_call.1']
    #allocation4 [shape = 's32[1]{0}', space=sflag, size = 0x4, scoped, tag = 'scoped memory for tpu_custom_call.1']
    #allocation5 [shape = 'u8[32768]{0}', space=vmem, size = 0x8000, scoped, tag = 'output window, operand 0, single buffered']
    %6 = vsyncpa [#allocation3], 0
    %7 = vsyncpa [#allocation4], 0
    // Predicated region
    $region2: #{tpu_custom_call.1} parent=1 // pred_check
      _
    $region3: #{tpu_custom_call.1} parent=1 // pred_check_branch
      %9 = sbr.rel (0) target = $region5
    $region4: #{tpu_custom_call.1} parent=1 // pred_region
      %s11 = ssub.s32 4096, 4096
      %12 = vsyncadd [#allocation3], %s11
      %s13 = sshll.u32 [#allocation2], 4
      %s14 = int_to_ptr.vmem [resolvable:$true] %s13
      %19 = dma.hbm_to_vmem [thread:$0]  %s0, 4096, %s14, [#allocation3], 128, 128, 8
    $region5: #{tpu_custom_call.1} parent=1 // pred_fallthru
      _
    // Predicated region
    $region6: #{tpu_custom_call.1} parent=1 // pred_check
      _
    $region7: #{tpu_custom_call.1} parent=1 // pred_check_branch
      %21 = sbr.rel (0) target = $region9
    $region8: #{tpu_custom_call.1} parent=1 // pred_region
      %22 = dma.done [#allocation3], 4096
    $region9: #{tpu_custom_call.1} parent=1 // pred_fallthru
      _
    %v23 = vld [vmem:[#allocation2] ss:$2 sm:$0xff]
    %s24 = scalar_lea.vmem [#allocation2], 1
    %v25 = vld [vmem:[%s24] ss:$2 sm:$0xff]
    %v26 = vmax.f32 %v23, %v25
    %s27 = scalar_lea.vmem [#allocation2], 16
    %v28 = vld [vmem:[%s27] ss:$2 sm:$0xff]
    %v29 = vmax.f32 %v26, %v28
    %s30 = scalar_lea.vmem %s27, 1 [#allocation2]
    %v31 = vld [vmem:[%s30] ss:$2 sm:$0xff]
    %v32 = vmax.f32 %v29, %v31
    %33 = vst [vmem:[#allocation5] sm:$0xff] %v32
    %s34 = scalar_lea.vmem [#allocation2], 32
    %v35 = vld [vmem:[%s34] ss:$2 sm:$0xff]
    %s36 = scalar_lea.vmem %s34, 1 [#allocation2]
    %v37 = vld [vmem:[%s36] ss:$2 sm:$0xff]
    %v38 = vmax.f32 %v35, %v37
    %s39 = scalar_lea.vmem [#allocation2], 48
    %v40 = vld [vmem:[%s39] ss:$2 sm:$0xff]
    %v41 = vmax.f32 %v38, %v40
    %s42 = scalar_lea.vmem %s39, 1 [#allocation2]
    %v43 = vld [vmem:[%s42] ss:$2 sm:$0xff]
    %v44 = vmax.f32 %v41, %v43
    %s45 = scalar_lea.vmem [#allocation5], 8
    %46 = vst [vmem:[%s45] sm:$0xff] %v44
    %s47 = scalar_lea.vmem [#allocation2], 64
    %v48 = vld [vmem:[%s47] ss:$2 sm:$0xff]
    %s49 = scalar_lea.vmem %s47, 1 [#allocation2]
    %v50 = vld [vmem:[%s49] ss:$2 sm:$0xff]
    %v51 = vmax.f32 %v48, %v50
    %s52 = scalar_lea.vmem [#allocation2], 80
    %v53 = vld [vmem:[%s52] ss:$2 sm:$0xff]
    %v54 = vmax.f32 %v51, %v53
    %s55 = scalar_lea.vmem %s52, 1 [#allocation2]
    %v56 = vld [vmem:[%s55] ss:$2 sm:$0xff]
    %v57 = vmax.f32 %v54, %v56
    %s58 = scalar_lea.vmem [#allocation5], 16
    %59 = vst [vmem:[%s58] sm:$0xff] %v57
    %s60 = scalar_lea.vmem [#allocation2], 96
    %v61 = vld [vmem:[%s60] ss:$2 sm:$0xff]
    %s62 = scalar_lea.vmem %s60, 1 [#allocation2]
    %v63 = vld [vmem:[%s62] ss:$2 sm:$0xff]
    %v64 = vmax.f32 %v61, %v63
    %s65 = scalar_lea.vmem [#allocation2], 112
    %v66 = vld [vmem:[%s65] ss:$2 sm:$0xff]
    %v67 = vmax.f32 %v64, %v66
    %s68 = scalar_lea.vmem %s65, 1 [#allocation2]
    %v69 = vld [vmem:[%s68] ss:$2 sm:$0xff]
    %v70 = vmax.f32 %v67, %v69
    %s71 = scalar_lea.vmem [#allocation5], 24
    %72 = vst [vmem:[%s71] sm:$0xff] %v70
    %s73 = scalar_lea.vmem [#allocation2], 128
    %v74 = vld [vmem:[%s73] ss:$2 sm:$0xff]
    %s75 = scalar_lea.vmem %s73, 1 [#allocation2]
    %v76 = vld [vmem:[%s75] ss:$2 sm:$0xff]
    %v77 = vmax.f32 %v74, %v76
    %s78 = scalar_lea.vmem [#allocation2], 144
    %v79 = vld [vmem:[%s78] ss:$2 sm:$0xff]
    %v80 = vmax.f32 %v77, %v79
    %s81 = scalar_lea.vmem %s78, 1 [#allocation2]
    %v82 = vld [vmem:[%s81] ss:$2 sm:$0xff]
    %v83 = vmax.f32 %v80, %v82
    %s84 = scalar_lea.vmem [#allocation5], 32
    %85 = vst [vmem:[%s84] sm:$0xff] %v83
    %s86 = scalar_lea.vmem [#allocation2], 160
    %v87 = vld [vmem:[%s86] ss:$2 sm:$0xff]
    %s88 = scalar_lea.vmem %s86, 1 [#allocation2]
    %v89 = vld [vmem:[%s88] ss:$2 sm:$0xff]
    %v90 = vmax.f32 %v87, %v89
    %s91 = scalar_lea.vmem [#allocation2], 176
    %v92 = vld [vmem:[%s91] ss:$2 sm:$0xff]
    %v93 = vmax.f32 %v90, %v92
    %s94 = scalar_lea.vmem %s91, 1 [#allocation2]
    %v95 = vld [vmem:[%s94] ss:$2 sm:$0xff]
    %v96 = vmax.f32 %v93, %v95
    %s97 = scalar_lea.vmem [#allocation5], 40
    %98 = vst [vmem:[%s97] sm:$0xff] %v96
    %s99 = scalar_lea.vmem [#allocation2], 192
    %v100 = vld [vmem:[%s99] ss:$2 sm:$0xff]
    %s101 = scalar_lea.vmem %s99, 1 [#allocation2]
    %v102 = vld [vmem:[%s101] ss:$2 sm:$0xff]
    %v103 = vmax.f32 %v100, %v102
    %s104 = scalar_lea.vmem [#allocation2], 208
    %v105 = vld [vmem:[%s104] ss:$2 sm:$0xff]
    %v106 = vmax.f32 %v103, %v105
    %s107 = scalar_lea.vmem %s104, 1 [#allocation2]
    %v108 = vld [vmem:[%s107] ss:$2 sm:$0xff]
    %v109 = vmax.f32 %v106, %v108
    %s110 = scalar_lea.vmem [#allocation5], 48
    %111 = vst [vmem:[%s110] sm:$0xff] %v109
    %s112 = scalar_lea.vmem [#allocation2], 224
    %v113 = vld [vmem:[%s112] ss:$2 sm:$0xff]
    %s114 = scalar_lea.vmem %s112, 1 [#allocation2]
    %v115 = vld [vmem:[%s114] ss:$2 sm:$0xff]
    %v116 = vmax.f32 %v113, %v115
    %s117 = scalar_lea.vmem [#allocation2], 240
    %v118 = vld [vmem:[%s117] ss:$2 sm:$0xff]
    %v119 = vmax.f32 %v116, %v118
    %s120 = scalar_lea.vmem %s117, 1 [#allocation2]
    %v121 = vld [vmem:[%s120] ss:$2 sm:$0xff]
    %v122 = vmax.f32 %v119, %v121
    %s123 = scalar_lea.vmem [#allocation5], 56
    %124 = vst [vmem:[%s123] sm:$0xff] %v122
    // Predicated region
    $region10: #{tpu_custom_call.1} parent=1 // pred_check
      _
    $region11: #{tpu_custom_call.1} parent=1 // pred_check_branch
      %126 = sbr.rel (0) target = $region13
    $region12: #{tpu_custom_call.1} parent=1 // pred_region
      %s128 = ssub.s32 1024, 1024
      %129 = vsyncadd [#allocation4], %s128
      %s130 = sshll.u32 [#allocation5], 4
      %s131 = int_to_ptr.vmem [resolvable:$true] %s130
      %136 = dma.vmem_to_hbm [thread:$0]  %s131, 1024, %s1, [#allocation4], 128, 128, 8
    $region13: #{tpu_custom_call.1} parent=1 // pred_fallthru
      _
    // Predicated region
    $region14: #{tpu_custom_call.1} parent=1 // pred_check
      _
    $region15: #{tpu_custom_call.1} parent=1 // pred_check_branch
      %138 = sbr.rel (0) target = $region17
    $region16: #{tpu_custom_call.1} parent=1 // pred_region
      %139 = dma.done [#allocation4], 1024
    $region17: #{tpu_custom_call.1} parent=1 // pred_fallthru
      _
    %140 = vsyncpa [#allocation3], 1
    %141 = vsyncpa [#allocation4], 1

</llo_original>
